<compile_context>
chip_gen: v7x
topology: tpu7x:2x2x1
jax: 0.10.0
libtpu: 0.0.40
codegen_flags: <defaults>
</compile_context>

<pallas_src>
import functools

import jax
import jax.numpy as jnp
from jax import lax
from jax.experimental import pallas as pl
from jax.experimental.pallas import tpu as pltpu


def _ssl_kernel(p1_ref, p2_hbm_ref, out_ref, *scratch, temperature, mxu_dtype):
    """One row tile of proj_1 against all of (pre-normalized) proj_2."""
    if mxu_dtype is None:
        p2n_ref, copy_sem = scratch
        p2_stage_ref = p2n_ref            # normalize in place (same dtype as input)
    else:
        p2n_ref, p2_stage_ref, copy_sem = scratch

    i = pl.program_id(0)
    tm = p1_ref.shape[0]
    inv_t = jnp.float32(1.0 / temperature)
    eps_sq = jnp.float32(1e-24)  # (1e-12)^2 -> mirrors F.normalize's max(||x||, 1e-12)

    # --- One-time staging: DMA proj_2 HBM -> VMEM, normalize, cast (hoisted). -----
    @pl.when(i == 0)
    def _():
        cp = pltpu.make_async_copy(p2_hbm_ref, p2_stage_ref, copy_sem)
        cp.start()
        cp.wait()
        p2 = p2_stage_ref[...].astype(jnp.float32)
        inv2 = lax.rsqrt(jnp.maximum(jnp.sum(p2 * p2, axis=1, keepdims=True), eps_sq))
        p2n_ref[...] = (p2 * inv2).astype(p2n_ref.dtype)

    # --- Per-tile work: normalize p1 tile, fold 1/T, matmul, stable LSE. ----------
    p1 = p1_ref[...].astype(jnp.float32)                       # (TM, Dp)
    inv1 = lax.rsqrt(jnp.maximum(jnp.sum(p1 * p1, axis=1, keepdims=True), eps_sq))
    p1n = p1 * (inv1 * inv_t)                                  # 1/T folded into LHS
    lhs = p1n if mxu_dtype is None else p1n.astype(mxu_dtype)
    rhs = p2n_ref[...]                                         # (B, Dp), pre-cast

    # sim tile (TM, B): contract last dims directly (no transpose of rhs).
    sim = lax.dot_general(lhs, rhs, (((1,), (1,)), ((), ())),
                          preferred_element_type=jnp.float32)

    # Diagonal of the global similarity matrix for this row tile, taken from the
    # SAME normalized/cast operands that fed the MXU (consistent in the bf16 path).
    if p2n_ref.shape[0] == tm:                                  # single-tile case
        p2d = p2n_ref[...]
    else:
        start = i * tm
        if tm % 8 == 0:
            start = pl.multiple_of(start, 8)
        p2d = p2n_ref[pl.ds(start, tm), :]
    diag = jnp.sum(lhs.astype(jnp.float32) * p2d.astype(jnp.float32),
                   axis=1, keepdims=True)                       # (TM, 1)

    # Stable per-row log-sum-exp; emit per-row cross-entropy partials.
    m = jnp.max(sim, axis=1, keepdims=True)
    lse = jnp.log(jnp.sum(jnp.exp(sim - m), axis=1, keepdims=True)) + m
    out_ref[...] = lse - diag                                   # (TM, 1)


def _vmem_capacity_bytes():
    try:
        info = pltpu.get_tpu_info()
        cap = getattr(info, "vmem_capacity_bytes", None)
        if cap:
            return int(cap)
    except Exception:
        pass
    return 64 * 1024 * 1024  # conservative (v7x per-TC) fallback


def _choose_tm(batch, d_pad, mxu_itemsize, vmem_budget, block_rows=None):
    """Largest row tile of proj_1 that divides batch and fits the VMEM budget."""
    if batch % 8 != 0:
        return batch  # single tile: block == full array satisfies the (8,128) rule
    p2_bytes = batch * d_pad * (4 if mxu_itemsize == 4 else 4 + mxu_itemsize)
    cands = [1024, 512, 256, 128, 64, 32, 16, 8]
    if block_rows is not None:
        cands = [c for c in cands if c <= block_rows] or [8]
    for tm in cands:
        if tm > batch or batch % tm != 0:
            continue
        footprint = (p2_bytes                 # staged + normalized proj_2
                     + 2 * tm * d_pad * 4     # double-buffered proj_1 tiles
                     + 3 * tm * batch * 4     # sim / exp / temporaries spill slab
                     + 2 * tm * 128 * 4)      # (generous) output tile buffers
        if footprint <= vmem_budget:
            return tm
    # Very large B*D: fall back to the smallest tile.  A flash-style column-tiled
    # online-LSE variant would bound VMEM independently of B; not needed at
    # realistic contrastive batch sizes.
    return 8


def self_supervised_loss(proj_1, proj_2, temperature=0.07, *,
                         mxu_dtype=jnp.bfloat16, block_rows=None):
    """JAX/Pallas equivalent of SelfSupervisedLoss.forward. Returns a scalar f32.

    mxu_dtype=jnp.bfloat16 (default) feeds the MXU bf16 operands (2-4x matmul
    throughput on v6e/v7x); softmax/LSE math stays f32.  Pass mxu_dtype=None or
    jnp.float32 for bit-faithful f32 numerics.
    """
    assert proj_1.shape == proj_2.shape and proj_1.ndim == 2
    B, D = proj_1.shape

    p1 = proj_1.astype(jnp.float32)
    p2 = proj_2.astype(jnp.float32)

    # Zero-pad the feature dim (lane / MXU contraction dim) to a multiple of 128.
    # Zero padding changes neither row norms nor dot products.
    d_pad = ((D + 127) // 128) * 128
    if d_pad != D:
        p1 = jnp.pad(p1, ((0, 0), (0, d_pad - D)))
        p2 = jnp.pad(p2, ((0, 0), (0, d_pad - D)))

    if mxu_dtype is not None and jnp.dtype(mxu_dtype) == jnp.dtype(jnp.float32):
        mxu_dtype = None
    mxu_itemsize = 4 if mxu_dtype is None else jnp.dtype(mxu_dtype).itemsize

    vmem_budget = min(int(0.75 * _vmem_capacity_bytes()), 100 * 1024 * 1024)
    tm = _choose_tm(B, d_pad, mxu_itemsize, vmem_budget, block_rows)
    nt = B // tm

    scratch_shapes = [
        pltpu.VMEM((B, d_pad), jnp.float32 if mxu_dtype is None else mxu_dtype),
    ]
    if mxu_dtype is not None:
        scratch_shapes.append(pltpu.VMEM((B, d_pad), jnp.float32))  # f32 staging
    scratch_shapes.append(pltpu.SemaphoreType.DMA(()))

    kernel = functools.partial(
        _ssl_kernel, temperature=float(temperature), mxu_dtype=mxu_dtype)

    per_row = pl.pallas_call(
        kernel,
        out_shape=jax.ShapeDtypeStruct((B, 1), jnp.float32),
        grid_spec=pltpu.PrefetchScalarGridSpec(
            num_scalar_prefetch=0,
            grid=(nt,),
            in_specs=[
                pl.BlockSpec((tm, d_pad), lambda i: (i, 0)),  # streamed proj_1 tiles
                pl.BlockSpec(memory_space=pl.ANY),            # proj_2 stays in HBM
            ],
            out_specs=pl.BlockSpec((tm, 1), lambda i: (i, 0)),
            scratch_shapes=scratch_shapes,
        ),
        compiler_params=pltpu.CompilerParams(
            # "arbitrary": grid step 0 initializes the normalized-p2 scratch that
            # later steps read (serial execution on one TensorCore).
            dimension_semantics=("arbitrary",),
            vmem_limit_bytes=vmem_budget,
        ),
    )(p1, p2)

    # Tiny wrapper-side mean over the per-row cross-entropy partials.
    return jnp.sum(per_row) / jnp.float32(B)


def _reference_loss(proj_1, proj_2, temperature=0.07):
    eps = 1e-12
    p1 = proj_1.astype(jnp.float32)
    p2 = proj_2.astype(jnp.float32)
    p1n = p1 / jnp.maximum(jnp.linalg.norm(p1, axis=1, keepdims=True), eps)
    p2n = p2 / jnp.maximum(jnp.linalg.norm(p2, axis=1, keepdims=True), eps)
    sim = (p1n @ p2n.T) / temperature
    b = sim.shape[0]
    logp = jax.nn.log_softmax(sim, axis=1)
    return -jnp.mean(logp[jnp.arange(b), jnp.arange(b)])


if __name__ == "__main__":
    key = jax.random.PRNGKey(0)
    k1, k2 = jax.random.split(key)

    # Small shapes matching the module's forward signature.
    batch_size, projection_dim = 8, 32
    proj_1 = jax.random.normal(k1, (batch_size, projection_dim), dtype=jnp.float32)
    proj_2 = jax.random.normal(k2, (batch_size, projection_dim), dtype=jnp.float32)
    ref = _reference_loss(proj_1, proj_2, temperature=0.07)

    # f32 MXU path: bit-faithful to the PyTorch module's numerics.
    loss_f32 = self_supervised_loss(proj_1, proj_2, temperature=0.07, mxu_dtype=None)
    jax.block_until_ready(loss_f32)
    assert jnp.allclose(loss_f32, ref, atol=2e-4, rtol=2e-4), (loss_f32, ref)

    # Default bf16-MXU throughput path; looser tolerance for the operand cast.
    loss_bf16 = self_supervised_loss(proj_1, proj_2, temperature=0.07)
    jax.block_until_ready(loss_bf16)
    assert jnp.allclose(loss_bf16, ref, atol=5e-2, rtol=5e-2), (loss_bf16, ref)

    # Larger batch to exercise the multi-tile grid + one-time p2 staging path.
    B2, D2 = 512, 128
    a = jax.random.normal(k1, (B2, D2), dtype=jnp.float32)
    b = jax.random.normal(k2, (B2, D2), dtype=jnp.float32)
    ref2 = _reference_loss(a, b, temperature=0.07)

    loss2 = self_supervised_loss(a, b, temperature=0.07, mxu_dtype=None)
    jax.block_until_ready(loss2)
    assert jnp.allclose(loss2, ref2, atol=1e-3, rtol=1e-3), (loss2, ref2)

    loss2_bf16 = self_supervised_loss(a, b, temperature=0.07)
    jax.block_until_ready(loss2_bf16)
    assert jnp.allclose(loss2_bf16, ref2, atol=5e-2, rtol=5e-2), (loss2_bf16, ref2)

    print("KERNEL_OK")
</pallas_src>

<mosaic_0001>
module attributes {stable_mosaic.version = 11 : i64} {
  func.func @_ssl_kernel(%arg0: i32, %arg1: memref<8x128xf32, #tpu.memory_space<vmem>>, %arg2: memref<8x128xf32, #tpu.memory_space<any>>, %arg3: memref<8x1xf32, #tpu.memory_space<vmem>>, %arg4: memref<8x128xf32, #tpu.memory_space<vmem>>, %arg5: memref<!tpu.dma_semaphore, #tpu.memory_space<semaphore_mem>>) attributes {dimension_semantics = [#tpu.dimension_semantics<arbitrary>], iteration_bounds = array<i64: 1>, scalar_prefetch = 0 : i64, scratch_operands = 2 : i64, tpu.core_type = #tpu.core_type<tc>, window_params = [{transform_indices = @transform_0, window_bounds = array<i64: 8, 128>}, {}, {transform_indices = @transform_2, window_bounds = array<i64: 8, 1>}]} {
    %c0_i32 = arith.constant 0 : i32
    %0 = arith.cmpi eq, %arg0, %c0_i32 : i32
    %1 = arith.extui %0 : i1 to i32
    %cst = arith.constant 1.000000e-24 : f32
    %c0_i32_0 = arith.constant 0 : i32
    %2 = arith.cmpi ne, %1, %c0_i32_0 : i32
    scf.if %2 {
      tpu.enqueue_dma source(%arg2 : memref<8x128xf32, #tpu.memory_space<any>>) target(%arg4 : memref<8x128xf32, #tpu.memory_space<vmem>>) target_semaphore(%arg5 : memref<!tpu.dma_semaphore, #tpu.memory_space<semaphore_mem>>)
      tpu.wait_dma2 semaphore(%arg5 : memref<!tpu.dma_semaphore, #tpu.memory_space<semaphore_mem>>) src(%arg2 : memref<8x128xf32, #tpu.memory_space<any>>) dst(%arg4 : memref<8x128xf32, #tpu.memory_space<vmem>>)
      %c0_15 = arith.constant 0 : index
      %c0_16 = arith.constant 0 : index
      %31 = vector.load %arg4[%c0_15, %c0_16] : memref<8x128xf32, #tpu.memory_space<vmem>>, vector<8x128xf32>
      %32 = arith.mulf %31, %31 : vector<8x128xf32>
      %cst_17 = arith.constant dense<0.000000e+00> : vector<8xf32>
      %33 = vector.multi_reduction <add>, %32, %cst_17 [1] : vector<8x128xf32> to vector<8xf32>
      %34 = vector.shape_cast %33 : vector<8xf32> to vector<8x1xf32>
      %35 = vector.broadcast %cst : f32 to vector<8x1xf32>
      %36 = arith.maximumf %34, %35 : vector<8x1xf32>
      %37 = math.rsqrt %36 : vector<8x1xf32>
      %38 = vector.broadcast %37 : vector<8x1xf32> to vector<8x128xf32>
      %39 = arith.mulf %31, %38 : vector<8x128xf32>
      %c0_18 = arith.constant 0 : index
      %c0_19 = arith.constant 0 : index
      %40 = vector.load %arg4[%c0_18, %c0_19] : memref<8x128xf32, #tpu.memory_space<vmem>>, vector<8x128xf32>
      tpu.vector_store %arg4[%c0_18, %c0_19], %39 {strides = array<i32>} : memref<8x128xf32, #tpu.memory_space<vmem>>, vector<8x128xf32>,
    } else {
    }
    %c0 = arith.constant 0 : index
    %c0_1 = arith.constant 0 : index
    %3 = vector.load %arg1[%c0, %c0_1] : memref<8x128xf32, #tpu.memory_space<vmem>>, vector<8x128xf32>
    %4 = arith.mulf %3, %3 : vector<8x128xf32>
    %cst_2 = arith.constant dense<0.000000e+00> : vector<8xf32>
    %5 = vector.multi_reduction <add>, %4, %cst_2 [1] : vector<8x128xf32> to vector<8xf32>
    %6 = vector.shape_cast %5 : vector<8xf32> to vector<8x1xf32>
    %cst_3 = arith.constant 1.000000e-24 : f32
    %7 = vector.broadcast %cst_3 : f32 to vector<8x1xf32>
    %8 = arith.maximumf %6, %7 : vector<8x1xf32>
    %9 = math.rsqrt %8 : vector<8x1xf32>
    %cst_4 = arith.constant 14.2857141 : f32
    %10 = vector.broadcast %cst_4 : f32 to vector<8x1xf32>
    %11 = arith.mulf %9, %10 : vector<8x1xf32>
    %12 = vector.broadcast %11 : vector<8x1xf32> to vector<8x128xf32>
    %13 = arith.mulf %3, %12 : vector<8x128xf32>
    %c0_5 = arith.constant 0 : index
    %c0_6 = arith.constant 0 : index
    %14 = vector.load %arg4[%c0_5, %c0_6] : memref<8x128xf32, #tpu.memory_space<vmem>>, vector<8x128xf32>
    %cst_7 = arith.constant dense<0.000000e+00> : vector<8x8xf32>
    %15 = tpu.matmul %13, %14, %cst_7 {dimension_numbers = #tpu.dot_dimension_numbers<[1], [1], [0], [0], [0, 0, 1, 0], [], []>} : vector<8x128xf32>, vector<8x128xf32>, vector<8x8xf32> -> vector<8x8xf32>
    %c0_8 = arith.constant 0 : index
    %c0_9 = arith.constant 0 : index
    %16 = vector.load %arg4[%c0_8, %c0_9] : memref<8x128xf32, #tpu.memory_space<vmem>>, vector<8x128xf32>
    %17 = arith.mulf %13, %16 : vector<8x128xf32>
    %cst_10 = arith.constant dense<0.000000e+00> : vector<8xf32>
    %18 = vector.multi_reduction <add>, %17, %cst_10 [1] : vector<8x128xf32> to vector<8xf32>
    %19 = vector.shape_cast %18 : vector<8xf32> to vector<8x1xf32>
    %cst_11 = arith.constant dense<0xFF800000> : vector<8xf32>
    %20 = vector.multi_reduction <maximumf>, %15, %cst_11 [1] : vector<8x8xf32> to vector<8xf32>
    %21 = vector.shape_cast %20 : vector<8xf32> to vector<8x1xf32>
    %22 = vector.broadcast %21 : vector<8x1xf32> to vector<8x8xf32>
    %23 = arith.subf %15, %22 : vector<8x8xf32>
    %24 = math.exp %23 : vector<8x8xf32>
    %cst_12 = arith.constant dense<0.000000e+00> : vector<8xf32>
    %25 = vector.multi_reduction <add>, %24, %cst_12 [1] : vector<8x8xf32> to vector<8xf32>
    %26 = vector.shape_cast %25 : vector<8xf32> to vector<8x1xf32>
    %27 = math.log %26 : vector<8x1xf32>
    %28 = arith.addf %27, %21 : vector<8x1xf32>
    %29 = arith.subf %28, %19 : vector<8x1xf32>
    %c0_13 = arith.constant 0 : index
    %c0_14 = arith.constant 0 : index
    %30 = vector.load %arg3[%c0_13, %c0_14] : memref<8x1xf32, #tpu.memory_space<vmem>>, vector<8x1xf32>
    tpu.vector_store %arg3[%c0_13, %c0_14], %29 {strides = array<i32>} : memref<8x1xf32, #tpu.memory_space<vmem>>, vector<8x1xf32>,
    return
  }
  func.func @transform_0(%arg0: i32) -> (i32, i32) {
    %c0_i32 = arith.constant 0 : i32
    %c0_i32_0 = arith.constant 0 : i32
    return %arg0, %c0_i32 : i32, i32
  }
  func.func @transform_2(%arg0: i32) -> (i32, i32) {
    %c0_i32 = arith.constant 0 : i32
    %c0_i32_0 = arith.constant 0 : i32
    return %arg0, %c0_i32 : i32, i32
  }
}

</mosaic_0001>

<llo_original>
// kernel: tpu_custom_call.1
$region0: #{tpu_custom_call.1}
  #allocation0 [shape = 'u32[]', space=smem, size = 0x4, offset = 0x4, fixed_abs, tag = 'smem constant byte address 0x4 - core index']
  #allocation1 [shape = 'u32[144,128]{1,0:T(1,128)}', space=vmem, size = 0x12000, scoped, tag = 'internal scratch']
  #allocation2 [shape = 'f32[8,128]{1,0:T(8,128)}', space=vmem, size = 0x1000, scoped, tag = 'scratch operand']
  #allocation3 [shape = 's32[1]{0}', space=sflag, size = 0x4, scoped, tag = 'scratch operand']
  #allocation6 [shape = 's32[]', space=sflag, size = 0x4, offset = 0, fixed_abs, tag = 'sflag constant byte address 0x0 - dummy sync flag']
  #allocation7 [shape = 's32[]', space=sflag, size = 0x4, offset = 0, fixed_abs, tag = 'sflag constant byte address 0x0 - dummy sync flag']
  #allocation8 [shape = 'u32[]', space=smem, size = 0x4, offset = 0x44, fixed_abs, tag = 'smem constant byte address 0x44 - assertion arg 0']
  #allocation9 [shape = 'u32[]', space=smem, size = 0x4, offset = 0x48, fixed_abs, tag = 'smem constant byte address 0x48 - assertion arg 1']
  %s0 = inlined_call_operand.hbm [shape: f32[8,128], index: 0, kind: input, shape index: {}]
  %s1 = inlined_call_operand.hbm [shape: f32[8,128], index: 1, kind: input, shape index: {}]
  %s2 = inlined_call_operand.vmem [shape: f32[8,1], index: 2, kind: output, shape index: {}]
  %s3 = sld [smem:[#allocation0]]
  $region26: #{tpu_custom_call.1} parent=0
    _
  %s5 = ssub.s32 1, %s3
  %s6 = scalar_select 0, %s5, %s3
  $region1: #{tpu_custom_call.1} parent=0
    #allocation4 [shape = 'u8[4096]{0}', space=vmem, size = 0x1000, scoped, tag = 'input window, operand 0, single buffered']
    #allocation5 [shape = 's32[1]{0}', space=sflag, size = 0x4, scoped, tag = 'scoped memory for tpu_custom_call.1']
    %7 = vsyncpa [#allocation5], 0
    // Predicated region
    $region2: #{tpu_custom_call.1} parent=1 // pred_check
      _
    $region3: #{tpu_custom_call.1} parent=1 // pred_check_branch
      %9 = sbr.rel (0) target = $region5
    $region4: #{tpu_custom_call.1} parent=1 // pred_region
      %s11 = ssub.s32 128, 128
      %12 = vsyncadd [#allocation5], %s11
      %s14 = sshll.u32 [#allocation4], 4
      %s15 = int_to_ptr.vmem [resolvable:$true] %s14
      %17 = dma.hbm_to_vmem [thread:$0]  %s0, 128, %s15, [#allocation5]
    $region5: #{tpu_custom_call.1} parent=1 // pred_fallthru
      _
    // Predicated region
    $region6: #{tpu_custom_call.1} parent=1 // pred_check
      _
    $region7: #{tpu_custom_call.1} parent=1 // pred_check_branch
      %19 = sbr.rel (0) target = $region9
    $region8: #{tpu_custom_call.1} parent=1 // pred_region
      %20 = dma.done [#allocation5], 128
    $region9: #{tpu_custom_call.1} parent=1 // pred_fallthru
      _
    %p21 = scmp.eq.s32.totalorder 0, 0
    // Predicated region
    $region10: #{tpu_custom_call.1} parent=1 // pred_check
      %p22 = pneg %p21
    $region11: #{tpu_custom_call.1} parent=1 // pred_check_branch
      %24 = sbr.rel (%p22) target = $region13
    $region12: #{tpu_custom_call.1} parent=1 // pred_region
      // Predicated region
      $region14: #{tpu_custom_call.1} parent=12 // pred_check
        _
      $region15: #{tpu_custom_call.1} parent=12 // pred_check_branch
        %26 = sbr.rel target = $region17
      $region16: #{tpu_custom_call.1} parent=12 // pred_region
        %27 = sst [smem:[#allocation8]] [#allocation7]
        %28 = sst [smem:[#allocation9]] [#allocation6]
      $region17: #{tpu_custom_call.1} parent=12 // pred_fallthru
        _
      %30 = shalt.err (0)
      %s32 = sshll.u32 [#allocation2], 4
      %s33 = int_to_ptr.vmem [resolvable:$true] %s32
      %35 = dma.hbm_to_vmem [thread:$0]  %s1, 128, %s33, [#allocation3]
      %s36 = smul.u32 8, 1
      %s37 = sshll.u32 %s36, 4
      %38 = dma.done [#allocation3], %s37
      %v39 = vld [vmem:[#allocation2] sm:$0xff]
      %v40 = vmul.f32 %v39, %v39
      %41 = vadd.xlane.f32.xlu0 %v40
      %v42 = vpop.xlane.xlu0 %41
      %v43 = vmax.f32 %v42, 1e-24
      %v44 = vrsqrt.pop %v43
      %v45 = vmul.f32 %v39, %v44
      %46 = vst [vmem:[#allocation2] sm:$0xff] %v45
    $region13: #{tpu_custom_call.1} parent=1 // pred_fallthru
      _
    %v47 = vld [vmem:[#allocation4] sm:$0xff]
    %v48 = vmul.f32 %v47, %v47
    %49 = vadd.xlane.f32.xlu0 %v48
    %v50 = vpop.xlane.xlu0 %49
    %v51 = vmax.f32 %v50, 1e-24
    %v52 = vrsqrt.pop %v51
    %v53 = vmul.f32 %v52, 14.285714
    %v54 = vmul.f32 %v47, %v53
    %v55 = vld [vmem:[#allocation2] sm:$0xff]
    %56 = vmatprep.subr.mxu0 0.0
    %57 = vmatpush1.xpose.msra.mxu0 %v55
    %58 = vmatprep.subr.mxu0 0.0
    %59 = vmatpush1.xpose.msra.mxu0 0.0
    %60 = vmatprep.subr.mxu0 0.0
    %61 = vmatpush1.xpose.msra.mxu0 0.0
    %62 = vmatprep.subr.mxu0 0.0
    %63 = vmatpush1.xpose.msra.mxu0 0.0
    %64 = vmatprep.subr.mxu0 0.0
    %65 = vmatpush1.xpose.msra.mxu0 0.0
    %66 = vmatprep.subr.mxu0 0.0
    %67 = vmatpush1.xpose.msra.mxu0 0.0
    %68 = vmatprep.subr.mxu0 0.0
    %69 = vmatpush1.xpose.msra.mxu0 0.0
    %70 = vmatprep.subr.mxu0 0.0
    %71 = vmatpush1.xpose.msra.mxu0 0.0
    %72 = vmatprep.subr.mxu0 0.0
    %73 = vmatpush1.xpose.msra.mxu0 0.0
    %74 = vmatprep.subr.mxu0 0.0
    %75 = vmatpush1.xpose.msra.mxu0 0.0
    %76 = vmatprep.subr.mxu0 0.0
    %77 = vmatpush1.xpose.msra.mxu0 0.0
    %78 = vmatprep.subr.mxu0 0.0
    %79 = vmatpush1.xpose.msra.mxu0 0.0
    %80 = vmatprep.subr.mxu0 0.0
    %81 = vmatpush1.xpose.msra.mxu0 0.0
    %82 = vmatprep.subr.mxu0 0.0
    %83 = vmatpush1.xpose.msra.mxu0 0.0
    %84 = vmatprep.subr.mxu0 0.0
    %85 = vmatpush1.xpose.msra.mxu0 0.0
    %86 = vmatprep.subr.mxu0 0.0
    %87 = vmatpush1.xpose.msra.mxu0 0.0
    %88 = vmatprep.subr.mxu0 0.0
    %89 = vmatpush1.xpose.msra.mxu0 0.0
    %90 = vmatprep.subr.mxu0 0.0
    %91 = vmatpush1.xpose.msra.mxu0 0.0
    %92 = vmatprep.subr.mxu0 0.0
    %93 = vmatpush1.xpose.msra.mxu0 0.0
    %94 = vmatprep.subr.mxu0 0.0
    %95 = vmatpush1.xpose.msra.mxu0 0.0
    %96 = vmatprep.subr.mxu0 0.0
    %97 = vmatpush1.xpose.msra.mxu0 0.0
    %98 = vmatprep.subr.mxu0 0.0
    %99 = vmatpush1.xpose.msra.mxu0 0.0
    %100 = vmatprep.subr.mxu0 0.0
    %101 = vmatpush1.xpose.msra.mxu0 0.0
    %102 = vmatprep.subr.mxu0 0.0
    %103 = vmatpush1.xpose.msra.mxu0 0.0
    %104 = vmatprep.subr.mxu0 0.0
    %105 = vmatpush1.xpose.msra.mxu0 0.0
    %106 = vmatprep.subr.mxu0 0.0
    %107 = vmatpush1.xpose.msra.mxu0 0.0
    %108 = vmatprep.subr.mxu0 0.0
    %109 = vmatpush1.xpose.msra.mxu0 0.0
    %110 = vmatprep.subr.mxu0 0.0
    %111 = vmatpush1.xpose.msra.mxu0 0.0
    %112 = vmatprep.subr.mxu0 0.0
    %113 = vmatpush1.xpose.msra.mxu0 0.0
    %114 = vmatprep.subr.mxu0 0.0
    %115 = vmatpush1.xpose.msra.mxu0 0.0
    %116 = vmatprep.subr.mxu0 0.0
    %117 = vmatpush1.xpose.msra.mxu0 0.0
    %118 = vmatprep.subr.mxu0 0.0
    %119 = vmatpush1.xpose.msra.mxu0 0.0
    %120 = vmatprep.mubr.f32.mxu0 0.0
    %121 = vmatmul.mubr.f32.gmra.mrb[0].mxu0 %v54
    %v122 = vpop.f32.mrb[0].mxu0
    %v123 = vadd.f32 0.0, %v122
    %v124 = vpop.f32.mrb[0].mxu0
    %125 = vdwg.mxu0
    %v126 = vmul.f32 %v54, %v55
    %127 = vadd.xlane.f32.xlu0 %v126
    %v128 = vpop.xlane.xlu0 %127
    %vm129 = vcmask 64512
    %v130 = vsel %vm129, %v123, -inf
    %131 = vmax.xlane.f32.xlu0 %v130
    %v132 = vpop.xlane.xlu0 %131
    %v133 = vsub.f32 %v123, %v132
    %v134 = vmul.f32 %v133, 1.442695
    %v135 = vpow.pop %v134
    %v136 = vsel %vm129, %v135, 0.0
    %137 = vadd.xlane.f32.xlu0 %v136
    %v138 = vpop.xlane.xlu0 %137
    %v139 = vlog2.pop %v138
    %v140 = vmul.f32 %v139, 0.6931472
    %v141 = vadd.f32 %v140, %v132
    %v142 = vsub.f32 %v141, %v128
    %vm143 = vcmask 7168
    %144 = vst.msk [vmem:[%s2] sm:$0xff] %vm143, %v142
    // Predicated region
    $region18: #{tpu_custom_call.1} parent=1 // pred_check
      _
    $region19: #{tpu_custom_call.1} parent=1 // pred_check_branch
      %146 = sbr.rel (0) target = $region21
    $region20: #{tpu_custom_call.1} parent=1 // pred_region
      _
    $region21: #{tpu_custom_call.1} parent=1 // pred_fallthru
      _
    // Predicated region
    $region22: #{tpu_custom_call.1} parent=1 // pred_check
      _
    $region23: #{tpu_custom_call.1} parent=1 // pred_check_branch
      %148 = sbr.rel (0) target = $region25
    $region24: #{tpu_custom_call.1} parent=1 // pred_region
      _
    $region25: #{tpu_custom_call.1} parent=1 // pred_fallthru
      _
    %149 = vsyncpa [#allocation5], 1
  %150 = vsyncmov [#allocation3]
  %s151 = vpop.sfrf %150
  %p152 = scmp.eq.s32.totalorder %s151, 0
  %p153 = pneg %p152
  %155 = shalt.err (%p153)

</llo_original>
